<compile_context>
chip_gen: v7x
topology: tpu7x:2x2x1
jax: 0.10.0
libtpu: 0.0.40
codegen_flags: <defaults>
</compile_context>

<pallas_src>
import functools

import jax
import jax.numpy as jnp
from jax.experimental import pallas as pl
from jax.experimental.pallas import tpu as pltpu


def _round_up(n, m):
    return ((n + m - 1) // m) * m


def _channel_attention_kernel(x_ref, w1_ref, b1_ref, w2_ref, b2_ref, o_ref,
                              sum_acc, max_acc, pooled_scr, *,
                              hw_total, hw_tile, acc_lanes):
    # x_ref:      (bt, C, hw_tile)   native dtype (f32 or bf16)
    # w1_ref:     (C, Ch)   b1_ref: (1, Ch)   w2_ref: (Ch, C)   b2_ref: (1, C)
    # o_ref:      (bt, C)
    # sum_acc:    (bt, C, acc_lanes) f32      lane-partial running sum
    # max_acc:    (bt, C, acc_lanes) x dtype  lane-partial running max
    # pooled_scr: (2*bt, C) f32               stacked [avg; max] for fused MLP
    hw_idx = pl.program_id(1)
    n_hw = pl.num_programs(1)
    n_chunks = hw_tile // acc_lanes
    needs_mask = (hw_total % hw_tile) != 0     # trace-time constant

    @pl.when(hw_idx == 0)
    def _init():
        sum_acc[...] = jnp.zeros_like(sum_acc)
        max_acc[...] = jnp.full_like(max_acc, -jnp.inf)

    x = x_ref[...]   # keep native dtype through the DMA

    def _accumulate(masked):
        # Elementwise (VPU-only) accumulation of the tile's 128-lane chunks.
        base = hw_idx * hw_tile
        part_sum = None
        part_max = None
        for k in range(n_chunks):
            chunk = x[:, :, k * acc_lanes:(k + 1) * acc_lanes]
            if masked:
                # Mask depends only on the lane index -> tiny (1,1,lanes) iota.
                lane = jax.lax.broadcasted_iota(jnp.int32, (1, 1, acc_lanes), 2)
                valid = (base + k * acc_lanes + lane) < hw_total
                c_sum = jnp.where(valid, chunk.astype(jnp.float32), 0.0)
                c_max = jnp.where(valid, chunk, -jnp.inf)   # stays in x dtype
            else:
                c_sum = chunk.astype(jnp.float32)
                c_max = chunk
            part_sum = c_sum if part_sum is None else part_sum + c_sum
            part_max = c_max if part_max is None else jnp.maximum(part_max, c_max)
        sum_acc[...] = sum_acc[...] + part_sum
        max_acc[...] = jnp.maximum(max_acc[...], part_max)

    if not needs_mask:
        _accumulate(masked=False)              # hot path: no mask work at all
    else:
        @pl.when(hw_idx < n_hw - 1)
        def _hot():
            _accumulate(masked=False)

        @pl.when(hw_idx == n_hw - 1)
        def _tail():
            _accumulate(masked=True)

    @pl.when(hw_idx == n_hw - 1)
    def _finalize():
        # Single cross-lane reduction of the lane-partial accumulators.
        avg = jnp.sum(sum_acc[...], axis=-1) * (1.0 / hw_total)        # (bt, C)
        mx = jnp.max(max_acc[...], axis=-1).astype(jnp.float32)        # (bt, C)
        bt = avg.shape[0]
        # Stack via a VMEM scratch (avoids a sublane-crossing concatenate) and
        # run both pooled vectors through the MLP in one MXU pass.
        pooled_scr[pl.ds(0, bt), :] = avg
        pooled_scr[pl.ds(bt, bt), :] = mx
        pooled = pooled_scr[...]                                       # (2*bt, C)
        h = jnp.dot(pooled, w1_ref[...],
                    preferred_element_type=jnp.float32) + b1_ref[...]
        h = jnp.maximum(h, 0.0)                                        # ReLU
        o = jnp.dot(h, w2_ref[...],
                    preferred_element_type=jnp.float32) + b2_ref[...]
        s = jax.nn.sigmoid(o)                                          # Sigmoid
        o_ref[...] = (s[:bt] + s[bt:]).astype(o_ref.dtype)


def _vmem_capacity_bytes():
    """Generation-aware per-core VMEM capacity (64 MiB v7x, 128 MiB v5e/v6e)."""
    try:
        info = pltpu.get_tpu_info()
        cap = getattr(info, "vmem_capacity_bytes", None)
        if cap:
            return int(cap)
    except Exception:
        pass
    return 64 * 1024 * 1024   # conservative fallback (v7x per-TC size)


def channel_attention(x, w1, b1, w2, b2, *, hw_tile=None, batch_tile=None):
    """x: (B, C, H, W). Returns channel attention weights, shape (B, C, 1, 1) f32."""
    b, c, h, w = x.shape
    hw = h * w
    x_flat = x.reshape(b, c, hw)
    x_itemsize = jnp.dtype(x.dtype).itemsize

    vmem_cap = _vmem_capacity_bytes()

    # Batch blocking: give the 'parallel' grid axis >= 2 steps (v7x megacore)
    # when it keeps the (8, *) sublane alignment of the output block.
    if batch_tile is not None:
        bt = batch_tile
    elif b >= 16 and b % 16 == 0:
        bt = b // 2
    else:
        bt = b
    n_b = pl.cdiv(b, bt)

    # HW tiling: largest 128-multiple tile such that the double-buffered x
    # stream stays within ~60% of VMEM, capped at 2048 lanes (HBM roofline
    # plateaus around 512-1024) and never padded past round_up(HW, 128).
    if hw_tile is None:
        if hw <= 128:
            hw_tile = hw       # full-extent last dim is always legal
        else:
            x_budget = int(vmem_cap * 0.6)
            cap = max(128, (x_budget // (2 * bt * c * x_itemsize)) // 128 * 128)
            hw_tile = int(min(2048, cap, _round_up(hw, 128)))
    n_hw = pl.cdiv(hw, hw_tile)
    acc_lanes = 128 if hw_tile % 128 == 0 else hw_tile

    hidden = w1.shape[1]

    # Explicit scoped-VMEM limit: double-buffered x tile + resident weights +
    # scratch + output + headroom, clamped to this generation's capacity.
    x_tile_bytes = bt * c * hw_tile * x_itemsize
    w_bytes = sum(int(a.size) * jnp.dtype(a.dtype).itemsize
                  for a in (w1, b1, w2, b2))
    scratch_bytes = bt * c * acc_lanes * (4 + x_itemsize) + 2 * bt * c * 4
    vmem_limit = 2 * x_tile_bytes + 2 * w_bytes + scratch_bytes + 2 * bt * c * 4
    vmem_limit += 8 * 1024 * 1024            # headroom for Mosaic internals
    vmem_limit = max(vmem_limit, 16 * 1024 * 1024)
    vmem_limit = min(vmem_limit, int(vmem_cap * 0.9))

    cost = pl.CostEstimate(
        flops=2 * b * c * hw + 2 * (2 * b) * (c * hidden + hidden * c),
        transcendentals=2 * b * c,
        bytes_accessed=b * c * hw * x_itemsize + w_bytes + b * c * 4,
    )

    kernel = functools.partial(_channel_attention_kernel,
                               hw_total=hw, hw_tile=hw_tile,
                               acc_lanes=acc_lanes)

    out = pl.pallas_call(
        kernel,
        out_shape=jax.ShapeDtypeStruct((b, c), jnp.float32),
        grid_spec=pltpu.PrefetchScalarGridSpec(
            num_scalar_prefetch=0,
            grid=(n_b, n_hw),   # reduction (HW) axis last
            in_specs=[
                # x: tiled over batch & HW, double-buffered by the pipeline.
                pl.BlockSpec((bt, c, hw_tile), lambda bi, hi: (bi, 0, hi)),
                # weights/biases: constant block index -> stay VMEM-resident.
                pl.BlockSpec(w1.shape, lambda bi, hi: (0, 0)),
                pl.BlockSpec(b1.shape, lambda bi, hi: (0, 0)),
                pl.BlockSpec(w2.shape, lambda bi, hi: (0, 0)),
                pl.BlockSpec(b2.shape, lambda bi, hi: (0, 0)),
            ],
            # Output block constant across HW: written once at the last step.
            out_specs=pl.BlockSpec((bt, c), lambda bi, hi: (bi, 0)),
            scratch_shapes=[
                pltpu.VMEM((bt, c, acc_lanes), jnp.float32),  # running sum
                pltpu.VMEM((bt, c, acc_lanes), x.dtype),      # running max
                pltpu.VMEM((2 * bt, c), jnp.float32),         # stacked pooled
            ],
        ),
        compiler_params=pltpu.CompilerParams(
            dimension_semantics=("parallel", "arbitrary"),
            vmem_limit_bytes=int(vmem_limit),
        ),
        cost_estimate=cost,
    )(x_flat, w1, b1, w2, b2)

    return out.reshape(b, c, 1, 1)


def init_params(key, in_channels, reduction_ratio=16):
    """Deterministic synthetic params matching nn.Linear shapes.

    PyTorch: fc[0] = Linear(C, C//r), fc[2] = Linear(C//r, C).
    Weights stored transposed (in, out) so the kernel does v @ W + b.
    """
    hidden = in_channels // reduction_ratio
    k1, k2, k3, k4 = jax.random.split(key, 4)
    bound1 = 1.0 / (in_channels ** 0.5)
    bound2 = 1.0 / (hidden ** 0.5)
    w1 = jax.random.uniform(k1, (in_channels, hidden), jnp.float32, -bound1, bound1)
    b1 = jax.random.uniform(k2, (1, hidden), jnp.float32, -bound1, bound1)
    w2 = jax.random.uniform(k3, (hidden, in_channels), jnp.float32, -bound2, bound2)
    b2 = jax.random.uniform(k4, (1, in_channels), jnp.float32, -bound2, bound2)
    return w1, b1, w2, b2


def _reference(x, w1, b1, w2, b2):
    b, c, h, w = x.shape
    xf = x.reshape(b, c, h * w).astype(jnp.float32)
    avg = jnp.mean(xf, axis=-1)
    mx = jnp.max(xf, axis=-1)

    def fc(v):
        return jax.nn.sigmoid(jnp.maximum(v @ w1 + b1, 0.0) @ w2 + b2)

    return (fc(avg) + fc(mx)).reshape(b, c, 1, 1)


if __name__ == "__main__":
    key = jax.random.PRNGKey(0)
    kx1, kx2, kx3, kx4, kp = jax.random.split(key, 5)

    B, C = 2, 32
    w1, b1, w2, b2 = init_params(kp, C, reduction_ratio=16)

    # Case 1: HW = 400, default tile rounds up to a 512-lane block (> HW) ->
    # exercises the oversized-block + tail-mask path in a single HW step.
    x1 = jax.random.normal(kx1, (B, C, 20, 20), jnp.float32)
    out1 = jax.block_until_ready(channel_attention(x1, w1, b1, w2, b2))
    ref1 = _reference(x1, w1, b1, w2, b2)
    assert out1.shape == (B, C, 1, 1)
    assert jnp.allclose(out1, ref1, atol=1e-5, rtol=1e-5)

    # Case 2: same data, forced hw_tile=128 -> 4 HW steps; mask runs only on
    # the (gated) last step, hot steps are pure elementwise accumulation.
    out2 = jax.block_until_ready(
        channel_attention(x1, w1, b1, w2, b2, hw_tile=128))
    assert jnp.allclose(out2, ref1, atol=1e-5, rtol=1e-5)

    # Case 3: small HW (8*8 = 64 <= 128) -> single full-extent block, no mask.
    x3 = jax.random.normal(kx2, (B, C, 8, 8), jnp.float32)
    out3 = jax.block_until_ready(channel_attention(x3, w1, b1, w2, b2))
    ref3 = _reference(x3, w1, b1, w2, b2)
    assert jnp.allclose(out3, ref3, atol=1e-5, rtol=1e-5)

    # Case 4: large batch -> batch axis blocked (bt=8, two 'parallel' steps);
    # verifies accumulator re-init at hw_idx==0 for every batch block.
    x4 = jax.random.normal(kx3, (16, C, 8, 8), jnp.float32)
    out4 = jax.block_until_ready(channel_attention(x4, w1, b1, w2, b2))
    ref4 = _reference(x4, w1, b1, w2, b2)
    assert jnp.allclose(out4, ref4, atol=1e-5, rtol=1e-5)

    # Case 5: bf16 input -> native-dtype max path, f32 sum accumulation.
    x5 = jax.random.normal(kx4, (B, C, 16, 16), jnp.bfloat16)
    out5 = jax.block_until_ready(channel_attention(x5, w1, b1, w2, b2))
    ref5 = _reference(x5, w1, b1, w2, b2)
    assert jnp.allclose(out5, ref5, atol=2e-2, rtol=2e-2)

    print("KERNEL_OK")
</pallas_src>

<mosaic_0001>
module attributes {stable_mosaic.version = 11 : i64} {
  func.func @_channel_attention_kernel(%arg0: i32, %arg1: i32, %arg2: memref<2x32x512xf32, #tpu.memory_space<vmem>>, %arg3: memref<32x2xf32, #tpu.memory_space<vmem>>, %arg4: memref<1x2xf32, #tpu.memory_space<vmem>>, %arg5: memref<2x32xf32, #tpu.memory_space<vmem>>, %arg6: memref<1x32xf32, #tpu.memory_space<vmem>>, %arg7: memref<2x32xf32, #tpu.memory_space<vmem>>, %arg8: memref<2x32x128xf32, #tpu.memory_space<vmem>>, %arg9: memref<2x32x128xf32, #tpu.memory_space<vmem>>, %arg10: memref<4x32xf32, #tpu.memory_space<vmem>>) attributes {dimension_semantics = [#tpu.dimension_semantics<parallel>, #tpu.dimension_semantics<arbitrary>], iteration_bounds = array<i64: 1, 1>, scalar_prefetch = 0 : i64, scratch_operands = 3 : i64, tpu.core_type = #tpu.core_type<tc>, window_params = [{transform_indices = @transform_0, window_bounds = array<i64: 2, 32, 512>}, {pipeline_mode = #tpu.pipeline_mode<synchronous>, transform_indices = @transform_1, window_bounds = array<i64: 32, 2>}, {pipeline_mode = #tpu.pipeline_mode<synchronous>, transform_indices = @transform_2, window_bounds = array<i64: 1, 2>}, {pipeline_mode = #tpu.pipeline_mode<synchronous>, transform_indices = @transform_3, window_bounds = array<i64: 2, 32>}, {pipeline_mode = #tpu.pipeline_mode<synchronous>, transform_indices = @transform_4, window_bounds = array<i64: 1, 32>}, {transform_indices = @transform_5, window_bounds = array<i64: 2, 32>}]} {
    %c0_i32 = arith.constant 0 : i32
    %0 = arith.cmpi eq, %arg1, %c0_i32 : i32
    %1 = arith.extui %0 : i1 to i32
    %c0_i32_0 = arith.constant 0 : i32
    %2 = arith.cmpi ne, %1, %c0_i32_0 : i32
    scf.if %2 {
      %cst = arith.constant 0.000000e+00 : f32
      %13 = vector.broadcast %cst : f32 to vector<2x32x128xf32>
      %c0_9 = arith.constant 0 : index
      %c0_10 = arith.constant 0 : index
      %c0_11 = arith.constant 0 : index
      %14 = vector.load %arg8[%c0_9, %c0_10, %c0_11] : memref<2x32x128xf32, #tpu.memory_space<vmem>>, vector<2x32x128xf32>
      tpu.vector_store %arg8[%c0_9, %c0_10, %c0_11], %13 {strides = array<i32>} : memref<2x32x128xf32, #tpu.memory_space<vmem>>, vector<2x32x128xf32>,
      %cst_12 = arith.constant 0xFF800000 : f32
      %15 = vector.broadcast %cst_12 : f32 to vector<2x32x128xf32>
      %c0_13 = arith.constant 0 : index
      %c0_14 = arith.constant 0 : index
      %c0_15 = arith.constant 0 : index
      %16 = vector.load %arg9[%c0_13, %c0_14, %c0_15] : memref<2x32x128xf32, #tpu.memory_space<vmem>>, vector<2x32x128xf32>
      tpu.vector_store %arg9[%c0_13, %c0_14, %c0_15], %15 {strides = array<i32>} : memref<2x32x128xf32, #tpu.memory_space<vmem>>, vector<2x32x128xf32>,
    } else {
    }
    %c0 = arith.constant 0 : index
    %c0_1 = arith.constant 0 : index
    %c0_2 = arith.constant 0 : index
    %3 = vector.load %arg2[%c0, %c0_1, %c0_2] : memref<2x32x512xf32, #tpu.memory_space<vmem>>, vector<2x32x512xf32>
    %c0_i32_3 = arith.constant 0 : i32
    %4 = arith.cmpi slt, %arg1, %c0_i32_3 : i32
    %5 = arith.extui %4 : i1 to i32
    %c0_i32_4 = arith.constant 0 : i32
    %6 = arith.cmpi ne, %5, %c0_i32_4 : i32
    scf.if %6 {
      %13 = vector.extract_strided_slice %3 {offsets = [0, 0, 0], sizes = [2, 32, 128], strides = [1, 1, 1]} : vector<2x32x512xf32> to vector<2x32x128xf32>
      %14 = vector.extract_strided_slice %3 {offsets = [0, 0, 128], sizes = [2, 32, 128], strides = [1, 1, 1]} : vector<2x32x512xf32> to vector<2x32x128xf32>
      %15 = arith.addf %13, %14 : vector<2x32x128xf32>
      %16 = arith.maximumf %13, %14 : vector<2x32x128xf32>
      %17 = vector.extract_strided_slice %3 {offsets = [0, 0, 256], sizes = [2, 32, 128], strides = [1, 1, 1]} : vector<2x32x512xf32> to vector<2x32x128xf32>
      %18 = arith.addf %15, %17 : vector<2x32x128xf32>
      %19 = arith.maximumf %16, %17 : vector<2x32x128xf32>
      %20 = vector.extract_strided_slice %3 {offsets = [0, 0, 384], sizes = [2, 32, 128], strides = [1, 1, 1]} : vector<2x32x512xf32> to vector<2x32x128xf32>
      %21 = arith.addf %18, %20 : vector<2x32x128xf32>
      %22 = arith.maximumf %19, %20 : vector<2x32x128xf32>
      %c0_9 = arith.constant 0 : index
      %c0_10 = arith.constant 0 : index
      %c0_11 = arith.constant 0 : index
      %23 = vector.load %arg8[%c0_9, %c0_10, %c0_11] : memref<2x32x128xf32, #tpu.memory_space<vmem>>, vector<2x32x128xf32>
      %24 = arith.addf %23, %21 : vector<2x32x128xf32>
      %c0_12 = arith.constant 0 : index
      %c0_13 = arith.constant 0 : index
      %c0_14 = arith.constant 0 : index
      %25 = vector.load %arg8[%c0_12, %c0_13, %c0_14] : memref<2x32x128xf32, #tpu.memory_space<vmem>>, vector<2x32x128xf32>
      tpu.vector_store %arg8[%c0_12, %c0_13, %c0_14], %24 {strides = array<i32>} : memref<2x32x128xf32, #tpu.memory_space<vmem>>, vector<2x32x128xf32>,
      %c0_15 = arith.constant 0 : index
      %c0_16 = arith.constant 0 : index
      %c0_17 = arith.constant 0 : index
      %26 = vector.load %arg9[%c0_15, %c0_16, %c0_17] : memref<2x32x128xf32, #tpu.memory_space<vmem>>, vector<2x32x128xf32>
      %27 = arith.maximumf %26, %22 : vector<2x32x128xf32>
      %c0_18 = arith.constant 0 : index
      %c0_19 = arith.constant 0 : index
      %c0_20 = arith.constant 0 : index
      %28 = vector.load %arg9[%c0_18, %c0_19, %c0_20] : memref<2x32x128xf32, #tpu.memory_space<vmem>>, vector<2x32x128xf32>
      tpu.vector_store %arg9[%c0_18, %c0_19, %c0_20], %27 {strides = array<i32>} : memref<2x32x128xf32, #tpu.memory_space<vmem>>, vector<2x32x128xf32>,
    } else {
    }
    %c0_i32_5 = arith.constant 0 : i32
    %7 = arith.cmpi eq, %arg1, %c0_i32_5 : i32
    %8 = arith.extui %7 : i1 to i32
    %c0_i32_6 = arith.constant 0 : i32
    %9 = arith.cmpi ne, %8, %c0_i32_6 : i32
    scf.if %9 {
      %c512_i32 = arith.constant 512 : i32
      %13 = arith.muli %arg1, %c512_i32 : i32
      %14 = vector.extract_strided_slice %3 {offsets = [0, 0, 0], sizes = [2, 32, 128], strides = [1, 1, 1]} : vector<2x32x512xf32> to vector<2x32x128xf32>
      %15 = tpu.iota {dimensions = array<i32: 2>} : vector<1x1x128xi32>
      %c0_i32_9 = arith.constant 0 : i32
      %16 = arith.addi %13, %c0_i32_9 : i32
      %17 = vector.broadcast %16 : i32 to vector<1x1x128xi32>
      %18 = arith.addi %17, %15 : vector<1x1x128xi32>
      %c400_i32 = arith.constant 400 : i32
      %19 = vector.broadcast %c400_i32 : i32 to vector<1x1x128xi32>
      %20 = arith.cmpi slt, %18, %19 : vector<1x1x128xi32>
      %cst = arith.constant 0.000000e+00 : f32
      %21 = vector.shape_cast %20 : vector<1x1x128xi1> to vector<1x1x128xi1>
      %22 = vector.broadcast %21 : vector<1x1x128xi1> to vector<2x32x128xi1>
      %23 = vector.broadcast %cst : f32 to vector<2x32x128xf32>
      %24 = arith.select %22, %14, %23 : vector<2x32x128xi1>, vector<2x32x128xf32>
      %cst_10 = arith.constant 0xFF800000 : f32
      %25 = vector.shape_cast %20 : vector<1x1x128xi1> to vector<1x1x128xi1>
      %26 = vector.broadcast %25 : vector<1x1x128xi1> to vector<2x32x128xi1>
      %27 = vector.broadcast %cst_10 : f32 to vector<2x32x128xf32>
      %28 = arith.select %26, %14, %27 : vector<2x32x128xi1>, vector<2x32x128xf32>
      %29 = vector.extract_strided_slice %3 {offsets = [0, 0, 128], sizes = [2, 32, 128], strides = [1, 1, 1]} : vector<2x32x512xf32> to vector<2x32x128xf32>
      %30 = tpu.iota {dimensions = array<i32: 2>} : vector<1x1x128xi32>
      %c128_i32 = arith.constant 128 : i32
      %31 = arith.addi %13, %c128_i32 : i32
      %32 = vector.broadcast %31 : i32 to vector<1x1x128xi32>
      %33 = arith.addi %32, %30 : vector<1x1x128xi32>
      %c400_i32_11 = arith.constant 400 : i32
      %34 = vector.broadcast %c400_i32_11 : i32 to vector<1x1x128xi32>
      %35 = arith.cmpi slt, %33, %34 : vector<1x1x128xi32>
      %cst_12 = arith.constant 0.000000e+00 : f32
      %36 = vector.shape_cast %35 : vector<1x1x128xi1> to vector<1x1x128xi1>
      %37 = vector.broadcast %36 : vector<1x1x128xi1> to vector<2x32x128xi1>
      %38 = vector.broadcast %cst_12 : f32 to vector<2x32x128xf32>
      %39 = arith.select %37, %29, %38 : vector<2x32x128xi1>, vector<2x32x128xf32>
      %cst_13 = arith.constant 0xFF800000 : f32
      %40 = vector.shape_cast %35 : vector<1x1x128xi1> to vector<1x1x128xi1>
      %41 = vector.broadcast %40 : vector<1x1x128xi1> to vector<2x32x128xi1>
      %42 = vector.broadcast %cst_13 : f32 to vector<2x32x128xf32>
      %43 = arith.select %41, %29, %42 : vector<2x32x128xi1>, vector<2x32x128xf32>
      %44 = arith.addf %24, %39 : vector<2x32x128xf32>
      %45 = arith.maximumf %28, %43 : vector<2x32x128xf32>
      %46 = vector.extract_strided_slice %3 {offsets = [0, 0, 256], sizes = [2, 32, 128], strides = [1, 1, 1]} : vector<2x32x512xf32> to vector<2x32x128xf32>
      %47 = tpu.iota {dimensions = array<i32: 2>} : vector<1x1x128xi32>
      %c256_i32 = arith.constant 256 : i32
      %48 = arith.addi %13, %c256_i32 : i32
      %49 = vector.broadcast %48 : i32 to vector<1x1x128xi32>
      %50 = arith.addi %49, %47 : vector<1x1x128xi32>
      %c400_i32_14 = arith.constant 400 : i32
      %51 = vector.broadcast %c400_i32_14 : i32 to vector<1x1x128xi32>
      %52 = arith.cmpi slt, %50, %51 : vector<1x1x128xi32>
      %cst_15 = arith.constant 0.000000e+00 : f32
      %53 = vector.shape_cast %52 : vector<1x1x128xi1> to vector<1x1x128xi1>
      %54 = vector.broadcast %53 : vector<1x1x128xi1> to vector<2x32x128xi1>
      %55 = vector.broadcast %cst_15 : f32 to vector<2x32x128xf32>
      %56 = arith.select %54, %46, %55 : vector<2x32x128xi1>, vector<2x32x128xf32>
      %cst_16 = arith.constant 0xFF800000 : f32
      %57 = vector.shape_cast %52 : vector<1x1x128xi1> to vector<1x1x128xi1>
      %58 = vector.broadcast %57 : vector<1x1x128xi1> to vector<2x32x128xi1>
      %59 = vector.broadcast %cst_16 : f32 to vector<2x32x128xf32>
      %60 = arith.select %58, %46, %59 : vector<2x32x128xi1>, vector<2x32x128xf32>
      %61 = arith.addf %44, %56 : vector<2x32x128xf32>
      %62 = arith.maximumf %45, %60 : vector<2x32x128xf32>
      %63 = vector.extract_strided_slice %3 {offsets = [0, 0, 384], sizes = [2, 32, 128], strides = [1, 1, 1]} : vector<2x32x512xf32> to vector<2x32x128xf32>
      %64 = tpu.iota {dimensions = array<i32: 2>} : vector<1x1x128xi32>
      %c384_i32 = arith.constant 384 : i32
      %65 = arith.addi %13, %c384_i32 : i32
      %66 = vector.broadcast %65 : i32 to vector<1x1x128xi32>
      %67 = arith.addi %66, %64 : vector<1x1x128xi32>
      %c400_i32_17 = arith.constant 400 : i32
      %68 = vector.broadcast %c400_i32_17 : i32 to vector<1x1x128xi32>
      %69 = arith.cmpi slt, %67, %68 : vector<1x1x128xi32>
      %cst_18 = arith.constant 0.000000e+00 : f32
      %70 = vector.shape_cast %69 : vector<1x1x128xi1> to vector<1x1x128xi1>
      %71 = vector.broadcast %70 : vector<1x1x128xi1> to vector<2x32x128xi1>
      %72 = vector.broadcast %cst_18 : f32 to vector<2x32x128xf32>
      %73 = arith.select %71, %63, %72 : vector<2x32x128xi1>, vector<2x32x128xf32>
      %cst_19 = arith.constant 0xFF800000 : f32
      %74 = vector.shape_cast %69 : vector<1x1x128xi1> to vector<1x1x128xi1>
      %75 = vector.broadcast %74 : vector<1x1x128xi1> to vector<2x32x128xi1>
      %76 = vector.broadcast %cst_19 : f32 to vector<2x32x128xf32>
      %77 = arith.select %75, %63, %76 : vector<2x32x128xi1>, vector<2x32x128xf32>
      %78 = arith.addf %61, %73 : vector<2x32x128xf32>
      %79 = arith.maximumf %62, %77 : vector<2x32x128xf32>
      %c0_20 = arith.constant 0 : index
      %c0_21 = arith.constant 0 : index
      %c0_22 = arith.constant 0 : index
      %80 = vector.load %arg8[%c0_20, %c0_21, %c0_22] : memref<2x32x128xf32, #tpu.memory_space<vmem>>, vector<2x32x128xf32>
      %81 = arith.addf %80, %78 : vector<2x32x128xf32>
      %c0_23 = arith.constant 0 : index
      %c0_24 = arith.constant 0 : index
      %c0_25 = arith.constant 0 : index
      %82 = vector.load %arg8[%c0_23, %c0_24, %c0_25] : memref<2x32x128xf32, #tpu.memory_space<vmem>>, vector<2x32x128xf32>
      tpu.vector_store %arg8[%c0_23, %c0_24, %c0_25], %81 {strides = array<i32>} : memref<2x32x128xf32, #tpu.memory_space<vmem>>, vector<2x32x128xf32>,
      %c0_26 = arith.constant 0 : index
      %c0_27 = arith.constant 0 : index
      %c0_28 = arith.constant 0 : index
      %83 = vector.load %arg9[%c0_26, %c0_27, %c0_28] : memref<2x32x128xf32, #tpu.memory_space<vmem>>, vector<2x32x128xf32>
      %84 = arith.maximumf %83, %79 : vector<2x32x128xf32>
      %c0_29 = arith.constant 0 : index
      %c0_30 = arith.constant 0 : index
      %c0_31 = arith.constant 0 : index
      %85 = vector.load %arg9[%c0_29, %c0_30, %c0_31] : memref<2x32x128xf32, #tpu.memory_space<vmem>>, vector<2x32x128xf32>
      tpu.vector_store %arg9[%c0_29, %c0_30, %c0_31], %84 {strides = array<i32>} : memref<2x32x128xf32, #tpu.memory_space<vmem>>, vector<2x32x128xf32>,
    } else {
    }
    %c0_i32_7 = arith.constant 0 : i32
    %10 = arith.cmpi eq, %arg1, %c0_i32_7 : i32
    %11 = arith.extui %10 : i1 to i32
    %c0_i32_8 = arith.constant 0 : i32
    %12 = arith.cmpi ne, %11, %c0_i32_8 : i32
    scf.if %12 {
      %c0_9 = arith.constant 0 : index
      %c0_10 = arith.constant 0 : index
      %c0_11 = arith.constant 0 : index
      %13 = vector.load %arg8[%c0_9, %c0_10, %c0_11] : memref<2x32x128xf32, #tpu.memory_space<vmem>>, vector<2x32x128xf32>
      %cst = arith.constant dense<0.000000e+00> : vector<2x32xf32>
      %14 = vector.multi_reduction <add>, %13, %cst [2] : vector<2x32x128xf32> to vector<2x32xf32>
      %cst_12 = arith.constant 2.500000e-03 : f32
      %15 = vector.broadcast %cst_12 : f32 to vector<2x32xf32>
      %16 = arith.mulf %14, %15 : vector<2x32xf32>
      %c0_13 = arith.constant 0 : index
      %c0_14 = arith.constant 0 : index
      %c0_15 = arith.constant 0 : index
      %17 = vector.load %arg9[%c0_13, %c0_14, %c0_15] : memref<2x32x128xf32, #tpu.memory_space<vmem>>, vector<2x32x128xf32>
      %cst_16 = arith.constant dense<0xFF800000> : vector<2x32xf32>
      %18 = vector.multi_reduction <maximumf>, %17, %cst_16 [2] : vector<2x32x128xf32> to vector<2x32xf32>
      %c0_17 = arith.constant 0 : index
      %c0_18 = arith.constant 0 : index
      %19 = vector.load %arg10[%c0_17, %c0_18] : memref<4x32xf32, #tpu.memory_space<vmem>>, vector<2x32xf32>
      tpu.vector_store %arg10[%c0_17, %c0_18], %16 {strides = array<i32>} : memref<4x32xf32, #tpu.memory_space<vmem>>, vector<2x32xf32>,
      %c2 = arith.constant 2 : index
      %c0_19 = arith.constant 0 : index
      %20 = vector.load %arg10[%c2, %c0_19] : memref<4x32xf32, #tpu.memory_space<vmem>>, vector<2x32xf32>
      tpu.vector_store %arg10[%c2, %c0_19], %18 {strides = array<i32>} : memref<4x32xf32, #tpu.memory_space<vmem>>, vector<2x32xf32>,
      %c0_20 = arith.constant 0 : index
      %c0_21 = arith.constant 0 : index
      %21 = vector.load %arg10[%c0_20, %c0_21] : memref<4x32xf32, #tpu.memory_space<vmem>>, vector<4x32xf32>
      %c0_22 = arith.constant 0 : index
      %c0_23 = arith.constant 0 : index
      %22 = vector.load %arg3[%c0_22, %c0_23] : memref<32x2xf32, #tpu.memory_space<vmem>>, vector<32x2xf32>
      %cst_24 = arith.constant dense<0.000000e+00> : vector<4x2xf32>
      %23 = tpu.matmul %21, %22, %cst_24 {dimension_numbers = #tpu.dot_dimension_numbers<[1], [0], [0], [1], [0, 0, 1, 1], [], []>} : vector<4x32xf32>, vector<32x2xf32>, vector<4x2xf32> -> vector<4x2xf32>
      %c0_25 = arith.constant 0 : index
      %c0_26 = arith.constant 0 : index
      %24 = vector.load %arg4[%c0_25, %c0_26] : memref<1x2xf32, #tpu.memory_space<vmem>>, vector<1x2xf32>
      %25 = vector.broadcast %24 : vector<1x2xf32> to vector<4x2xf32>
      %26 = arith.addf %23, %25 : vector<4x2xf32>
      %cst_27 = arith.constant 0.000000e+00 : f32
      %27 = vector.broadcast %cst_27 : f32 to vector<4x2xf32>
      %28 = arith.maximumf %26, %27 : vector<4x2xf32>
      %c0_28 = arith.constant 0 : index
      %c0_29 = arith.constant 0 : index
      %29 = vector.load %arg5[%c0_28, %c0_29] : memref<2x32xf32, #tpu.memory_space<vmem>>, vector<2x32xf32>
      %cst_30 = arith.constant dense<0.000000e+00> : vector<4x32xf32>
      %30 = tpu.matmul %28, %29, %cst_30 {dimension_numbers = #tpu.dot_dimension_numbers<[1], [0], [0], [1], [0, 0, 1, 1], [], []>} : vector<4x2xf32>, vector<2x32xf32>, vector<4x32xf32> -> vector<4x32xf32>
      %c0_31 = arith.constant 0 : index
      %c0_32 = arith.constant 0 : index
      %31 = vector.load %arg6[%c0_31, %c0_32] : memref<1x32xf32, #tpu.memory_space<vmem>>, vector<1x32xf32>
      %32 = vector.broadcast %31 : vector<1x32xf32> to vector<4x32xf32>
      %33 = arith.addf %30, %32 : vector<4x32xf32>
      %34 = arith.negf %33 : vector<4x32xf32>
      %35 = math.exp %34 : vector<4x32xf32>
      %cst_33 = arith.constant 1.000000e+00 : f32
      %36 = vector.broadcast %cst_33 : f32 to vector<4x32xf32>
      %37 = arith.addf %36, %35 : vector<4x32xf32>
      %38 = arith.divf %36, %37 : vector<4x32xf32>
      %39 = vector.extract_strided_slice %38 {offsets = [0, 0], sizes = [2, 32], strides = [1, 1]} : vector<4x32xf32> to vector<2x32xf32>
      %40 = vector.extract_strided_slice %38 {offsets = [2, 0], sizes = [2, 32], strides = [1, 1]} : vector<4x32xf32> to vector<2x32xf32>
      %41 = arith.addf %39, %40 : vector<2x32xf32>
      %c0_34 = arith.constant 0 : index
      %c0_35 = arith.constant 0 : index
      %42 = vector.load %arg7[%c0_34, %c0_35] : memref<2x32xf32, #tpu.memory_space<vmem>>, vector<2x32xf32>
      tpu.vector_store %arg7[%c0_34, %c0_35], %41 {strides = array<i32>} : memref<2x32xf32, #tpu.memory_space<vmem>>, vector<2x32xf32>,
    } else {
    }
    return
  }
  func.func @transform_0(%arg0: i32, %arg1: i32) -> (i32, i32, i32) {
    %c0_i32 = arith.constant 0 : i32
    %c0_i32_0 = arith.constant 0 : i32
    return %arg0, %c0_i32, %arg1 : i32, i32, i32
  }
  func.func @transform_1(%arg0: i32, %arg1: i32) -> (i32, i32) {
    %c0_i32 = arith.constant 0 : i32
    %c0_i32_0 = arith.constant 0 : i32
    %c0_i32_1 = arith.constant 0 : i32
    return %c0_i32, %c0_i32_0 : i32, i32
  }
  func.func @transform_2(%arg0: i32, %arg1: i32) -> (i32, i32) {
    %c0_i32 = arith.constant 0 : i32
    %c0_i32_0 = arith.constant 0 : i32
    %c0_i32_1 = arith.constant 0 : i32
    return %c0_i32, %c0_i32_0 : i32, i32
  }
  func.func @transform_3(%arg0: i32, %arg1: i32) -> (i32, i32) {
    %c0_i32 = arith.constant 0 : i32
    %c0_i32_0 = arith.constant 0 : i32
    %c0_i32_1 = arith.constant 0 : i32
    return %c0_i32, %c0_i32_0 : i32, i32
  }
  func.func @transform_4(%arg0: i32, %arg1: i32) -> (i32, i32) {
    %c0_i32 = arith.constant 0 : i32
    %c0_i32_0 = arith.constant 0 : i32
    %c0_i32_1 = arith.constant 0 : i32
    return %c0_i32, %c0_i32_0 : i32, i32
  }
  func.func @transform_5(%arg0: i32, %arg1: i32) -> (i32, i32) {
    %c0_i32 = arith.constant 0 : i32
    %c0_i32_0 = arith.constant 0 : i32
    return %arg0, %c0_i32 : i32, i32
  }
}

</mosaic_0001>

<llo_original>
// kernel: tpu_custom_call.1
$region0: #{tpu_custom_call.1}
  #allocation0 [shape = 'u32[]', space=smem, size = 0x4, offset = 0x4, fixed_abs, tag = 'smem constant byte address 0x4 - core index']
  #allocation1 [shape = 'u32[144,128]{1,0:T(1,128)}', space=vmem, size = 0x12000, scoped, tag = 'internal scratch']
  #allocation2 [shape = 'f32[2,32,128]{2,1,0:T(8,128)}', space=vmem, size = 0x8000, scoped, tag = 'scratch operand']
  #allocation3 [shape = 'f32[2,32,128]{2,1,0:T(8,128)}', space=vmem, size = 0x8000, scoped, tag = 'scratch operand']
  #allocation4 [shape = 'f32[4,32]{1,0:T(4,128)}', space=vmem, size = 0x800, scoped, tag = 'scratch operand']
  %s0 = inlined_call_operand.hbm [shape: f32[2,32,400], index: 0, kind: input, shape index: {}]
  %s1 = inlined_call_operand.vmem [shape: f32[32,2], index: 1, kind: input, shape index: {}]
  %s2 = inlined_call_operand.vmem [shape: f32[1,2], index: 2, kind: input, shape index: {}]
  %s3 = inlined_call_operand.vmem [shape: f32[2,32], index: 3, kind: input, shape index: {}]
  %s4 = inlined_call_operand.vmem [shape: f32[1,32], index: 4, kind: input, shape index: {}]
  %s5 = inlined_call_operand.hbm [shape: f32[2,32], index: 5, kind: output, shape index: {}]
  %s6 = sld [smem:[#allocation0]]
  $region46: #{tpu_custom_call.1} parent=0
    _
  %s8 = ssub.s32 1, %s6
  %s9 = scalar_select 0, %s8, %s6
  $region1: #{tpu_custom_call.1} parent=0
    #allocation5 [shape = 'u8[131072]{0}', space=vmem, size = 0x20000, scoped, tag = 'input window, operand 0, single buffered']
    #allocation6 [shape = 's32[1]{0}', space=sflag, size = 0x4, scoped, tag = 'scoped memory for tpu_custom_call.1']
    #allocation7 [shape = 's32[1]{0}', space=sflag, size = 0x4, scoped, tag = 'scoped memory for tpu_custom_call.1']
    #allocation8 [shape = 'u8[1024]{0}', space=vmem, size = 0x400, scoped, tag = 'output window, operand 0, single buffered']
    %10 = vsyncpa [#allocation6], 0
    %11 = vsyncpa [#allocation7], 0
    // Predicated region
    $region2: #{tpu_custom_call.1} parent=1 // pred_check
      _
    $region3: #{tpu_custom_call.1} parent=1 // pred_check_branch
      %13 = sbr.rel (0) target = $region5
    $region4: #{tpu_custom_call.1} parent=1 // pred_region
      %s15 = ssub.s32 4096, 4096
      %16 = vsyncadd [#allocation6], %s15
      %s17 = sshll.u32 [#allocation5], 4
      %s18 = int_to_ptr.vmem [resolvable:$true] %s17
      %23 = dma.hbm_to_vmem [thread:$0]  %s0, 4096, %s18, [#allocation6], 512, 512, 32
    $region5: #{tpu_custom_call.1} parent=1 // pred_fallthru
      _
    // Predicated region
    $region6: #{tpu_custom_call.1} parent=1 // pred_check
      _
    $region7: #{tpu_custom_call.1} parent=1 // pred_check_branch
      %25 = sbr.rel (0) target = $region9
    $region8: #{tpu_custom_call.1} parent=1 // pred_region
      _
    $region9: #{tpu_custom_call.1} parent=1 // pred_fallthru
      _
    // Predicated region
    $region10: #{tpu_custom_call.1} parent=1 // pred_check
      _
    $region11: #{tpu_custom_call.1} parent=1 // pred_check_branch
      %27 = sbr.rel (0) target = $region13
    $region12: #{tpu_custom_call.1} parent=1 // pred_region
      _
    $region13: #{tpu_custom_call.1} parent=1 // pred_fallthru
      _
    // Predicated region
    $region14: #{tpu_custom_call.1} parent=1 // pred_check
      _
    $region15: #{tpu_custom_call.1} parent=1 // pred_check_branch
      %29 = sbr.rel (0) target = $region17
    $region16: #{tpu_custom_call.1} parent=1 // pred_region
      _
    $region17: #{tpu_custom_call.1} parent=1 // pred_fallthru
      _
    // Predicated region
    $region18: #{tpu_custom_call.1} parent=1 // pred_check
      _
    $region19: #{tpu_custom_call.1} parent=1 // pred_check_branch
      %31 = sbr.rel (0) target = $region21
    $region20: #{tpu_custom_call.1} parent=1 // pred_region
      _
    $region21: #{tpu_custom_call.1} parent=1 // pred_fallthru
      _
    // Predicated region
    $region22: #{tpu_custom_call.1} parent=1 // pred_check
      _
    $region23: #{tpu_custom_call.1} parent=1 // pred_check_branch
      %33 = sbr.rel (0) target = $region25
    $region24: #{tpu_custom_call.1} parent=1 // pred_region
      %34 = dma.done [#allocation6], 4096
    $region25: #{tpu_custom_call.1} parent=1 // pred_fallthru
      _
    %p35 = scmp.eq.s32.totalorder 0, 0
    // Predicated region
    $region26: #{tpu_custom_call.1} parent=1 // pred_check
      %p36 = pneg %p35
    $region27: #{tpu_custom_call.1} parent=1 // pred_check_branch
      %38 = sbr.rel (%p36) target = $region29
    $region28: #{tpu_custom_call.1} parent=1 // pred_region
      %39 = vst [vmem:[#allocation2] sm:$0xff] 0.0
      %40 = vst [vmem:[#allocation2 + $0x8] sm:$0xff] 0.0
      %41 = vst [vmem:[#allocation2 + $0x10] sm:$0xff] 0.0
      %42 = vst [vmem:[#allocation2 + $0x18] sm:$0xff] 0.0
      %43 = vst [vmem:[#allocation2 + $0x20] sm:$0xff] 0.0
      %44 = vst [vmem:[#allocation2 + $0x28] sm:$0xff] 0.0
      %45 = vst [vmem:[#allocation2 + $0x30] sm:$0xff] 0.0
      %46 = vst [vmem:[#allocation2 + $0x38] sm:$0xff] 0.0
      %47 = vst [vmem:[#allocation3] sm:$0xff] -inf
      %48 = vst [vmem:[#allocation3 + $0x8] sm:$0xff] -inf
      %49 = vst [vmem:[#allocation3 + $0x10] sm:$0xff] -inf
      %50 = vst [vmem:[#allocation3 + $0x18] sm:$0xff] -inf
      %51 = vst [vmem:[#allocation3 + $0x20] sm:$0xff] -inf
      %52 = vst [vmem:[#allocation3 + $0x28] sm:$0xff] -inf
      %53 = vst [vmem:[#allocation3 + $0x30] sm:$0xff] -inf
      %54 = vst [vmem:[#allocation3 + $0x38] sm:$0xff] -inf
    $region29: #{tpu_custom_call.1} parent=1 // pred_fallthru
      _
    %v55 = vld [vmem:[#allocation5] sm:$0xff]
    %v56 = vld [vmem:[#allocation5 + $0x8] sm:$0xff]
    %v57 = vld [vmem:[#allocation5 + $0x10] sm:$0xff]
    %v58 = vld [vmem:[#allocation5 + $0x18] sm:$0xff]
    %v59 = vld [vmem:[#allocation5 + $0x20] sm:$0xff]
    %v60 = vld [vmem:[#allocation5 + $0x28] sm:$0xff]
    %v61 = vld [vmem:[#allocation5 + $0x30] sm:$0xff]
    %v62 = vld [vmem:[#allocation5 + $0x38] sm:$0xff]
    %v63 = vld [vmem:[#allocation5 + $0x40] sm:$0xff]
    %v64 = vld [vmem:[#allocation5 + $0x48] sm:$0xff]
    %v65 = vld [vmem:[#allocation5 + $0x50] sm:$0xff]
    %v66 = vld [vmem:[#allocation5 + $0x58] sm:$0xff]
    %v67 = vld [vmem:[#allocation5 + $0x60] sm:$0xff]
    %v68 = vld [vmem:[#allocation5 + $0x68] sm:$0xff]
    %v69 = vld [vmem:[#allocation5 + $0x70] sm:$0xff]
    %v70 = vld [vmem:[#allocation5 + $0x78] sm:$0xff]
    %v71 = vld [vmem:[#allocation5 + $0x80] sm:$0xff]
    %v72 = vld [vmem:[#allocation5 + $0x88] sm:$0xff]
    %v73 = vld [vmem:[#allocation5 + $0x90] sm:$0xff]
    %v74 = vld [vmem:[#allocation5 + $0x98] sm:$0xff]
    %v75 = vld [vmem:[#allocation5 + $0xa0] sm:$0xff]
    %v76 = vld [vmem:[#allocation5 + $0xa8] sm:$0xff]
    %v77 = vld [vmem:[#allocation5 + $0xb0] sm:$0xff]
    %v78 = vld [vmem:[#allocation5 + $0xb8] sm:$0xff]
    %v79 = vld [vmem:[#allocation5 + $0xc0] sm:$0xff]
    %v80 = vld [vmem:[#allocation5 + $0xc8] sm:$0xff]
    %v81 = vld [vmem:[#allocation5 + $0xd0] sm:$0xff]
    %v82 = vld [vmem:[#allocation5 + $0xd8] sm:$0xff]
    %v83 = vld [vmem:[#allocation5 + $0xe0] sm:$0xff]
    %v84 = vld [vmem:[#allocation5 + $0xe8] sm:$0xff]
    %v85 = vld [vmem:[#allocation5 + $0xf0] sm:$0xff]
    %v86 = vld [vmem:[#allocation5 + $0xf8] sm:$0xff]
    %p87 = scmp.lt.s32.totalorder 0, 0
    // Predicated region
    $region30: #{tpu_custom_call.1} parent=1 // pred_check
      %p88 = pneg %p87
    $region31: #{tpu_custom_call.1} parent=1 // pred_check_branch
      %90 = sbr.rel (%p88) target = $region33
    $region32: #{tpu_custom_call.1} parent=1 // pred_region
      %v91 = vadd.f32 %v55, %v56
      %v92 = vadd.f32 %v59, %v60
      %v93 = vadd.f32 %v63, %v64
      %v94 = vadd.f32 %v67, %v68
      %v95 = vadd.f32 %v71, %v72
      %v96 = vadd.f32 %v75, %v76
      %v97 = vadd.f32 %v79, %v80
      %v98 = vadd.f32 %v83, %v84
      %v99 = vmax.f32 %v55, %v56
      %v100 = vmax.f32 %v59, %v60
      %v101 = vmax.f32 %v63, %v64
      %v102 = vmax.f32 %v67, %v68
      %v103 = vmax.f32 %v71, %v72
      %v104 = vmax.f32 %v75, %v76
      %v105 = vmax.f32 %v79, %v80
      %v106 = vmax.f32 %v83, %v84
      %v107 = vadd.f32 %v91, %v57
      %v108 = vadd.f32 %v92, %v61
      %v109 = vadd.f32 %v93, %v65
      %v110 = vadd.f32 %v94, %v69
      %v111 = vadd.f32 %v95, %v73
      %v112 = vadd.f32 %v96, %v77
      %v113 = vadd.f32 %v97, %v81
      %v114 = vadd.f32 %v98, %v85
      %v115 = vmax.f32 %v99, %v57
      %v116 = vmax.f32 %v100, %v61
      %v117 = vmax.f32 %v101, %v65
      %v118 = vmax.f32 %v102, %v69
      %v119 = vmax.f32 %v103, %v73
      %v120 = vmax.f32 %v104, %v77
      %v121 = vmax.f32 %v105, %v81
      %v122 = vmax.f32 %v106, %v85
      %v123 = vadd.f32 %v107, %v58
      %v124 = vadd.f32 %v108, %v62
      %v125 = vadd.f32 %v109, %v66
      %v126 = vadd.f32 %v110, %v70
      %v127 = vadd.f32 %v111, %v74
      %v128 = vadd.f32 %v112, %v78
      %v129 = vadd.f32 %v113, %v82
      %v130 = vadd.f32 %v114, %v86
      %v131 = vmax.f32 %v115, %v58
      %v132 = vmax.f32 %v116, %v62
      %v133 = vmax.f32 %v117, %v66
      %v134 = vmax.f32 %v118, %v70
      %v135 = vmax.f32 %v119, %v74
      %v136 = vmax.f32 %v120, %v78
      %v137 = vmax.f32 %v121, %v82
      %v138 = vmax.f32 %v122, %v86
      %v139 = vld [vmem:[#allocation2] sm:$0xff]
      %v140 = vld [vmem:[#allocation2 + $0x8] sm:$0xff]
      %v141 = vld [vmem:[#allocation2 + $0x10] sm:$0xff]
      %v142 = vld [vmem:[#allocation2 + $0x18] sm:$0xff]
      %v143 = vld [vmem:[#allocation2 + $0x20] sm:$0xff]
      %v144 = vld [vmem:[#allocation2 + $0x28] sm:$0xff]
      %v145 = vld [vmem:[#allocation2 + $0x30] sm:$0xff]
      %v146 = vld [vmem:[#allocation2 + $0x38] sm:$0xff]
      %v147 = vadd.f32 %v139, %v123
      %v148 = vadd.f32 %v140, %v124
      %v149 = vadd.f32 %v141, %v125
      %v150 = vadd.f32 %v142, %v126
      %v151 = vadd.f32 %v143, %v127
      %v152 = vadd.f32 %v144, %v128
      %v153 = vadd.f32 %v145, %v129
      %v154 = vadd.f32 %v146, %v130
      %155 = vst [vmem:[#allocation2] sm:$0xff] %v147
      %156 = vst [vmem:[#allocation2 + $0x8] sm:$0xff] %v148
      %157 = vst [vmem:[#allocation2 + $0x10] sm:$0xff] %v149
      %158 = vst [vmem:[#allocation2 + $0x18] sm:$0xff] %v150
      %159 = vst [vmem:[#allocation2 + $0x20] sm:$0xff] %v151
      %160 = vst [vmem:[#allocation2 + $0x28] sm:$0xff] %v152
      %161 = vst [vmem:[#allocation2 + $0x30] sm:$0xff] %v153
      %162 = vst [vmem:[#allocation2 + $0x38] sm:$0xff] %v154
      %v163 = vld [vmem:[#allocation3] sm:$0xff]
      %v164 = vld [vmem:[#allocation3 + $0x8] sm:$0xff]
      %v165 = vld [vmem:[#allocation3 + $0x10] sm:$0xff]
      %v166 = vld [vmem:[#allocation3 + $0x18] sm:$0xff]
      %v167 = vld [vmem:[#allocation3 + $0x20] sm:$0xff]
      %v168 = vld [vmem:[#allocation3 + $0x28] sm:$0xff]
      %v169 = vld [vmem:[#allocation3 + $0x30] sm:$0xff]
      %v170 = vld [vmem:[#allocation3 + $0x38] sm:$0xff]
      %v171 = vmax.f32 %v163, %v131
      %v172 = vmax.f32 %v164, %v132
      %v173 = vmax.f32 %v165, %v133
      %v174 = vmax.f32 %v166, %v134
      %v175 = vmax.f32 %v167, %v135
      %v176 = vmax.f32 %v168, %v136
      %v177 = vmax.f32 %v169, %v137
      %v178 = vmax.f32 %v170, %v138
      %179 = vst [vmem:[#allocation3] sm:$0xff] %v171
      %180 = vst [vmem:[#allocation3 + $0x8] sm:$0xff] %v172
      %181 = vst [vmem:[#allocation3 + $0x10] sm:$0xff] %v173
      %182 = vst [vmem:[#allocation3 + $0x18] sm:$0xff] %v174
      %183 = vst [vmem:[#allocation3 + $0x20] sm:$0xff] %v175
      %184 = vst [vmem:[#allocation3 + $0x28] sm:$0xff] %v176
      %185 = vst [vmem:[#allocation3 + $0x30] sm:$0xff] %v177
      %186 = vst [vmem:[#allocation3 + $0x38] sm:$0xff] %v178
    $region33: #{tpu_custom_call.1} parent=1 // pred_fallthru
      _
    // Predicated region
    $region34: #{tpu_custom_call.1} parent=1 // pred_check
      %p187 = pneg %p35
    $region35: #{tpu_custom_call.1} parent=1 // pred_check_branch
      %189 = sbr.rel (%p187) target = $region37
    $region36: #{tpu_custom_call.1} parent=1 // pred_region
      %s190 = smul.u32 0, 512
      %v191 = vlaneseq
      %v192 = vand.u32 %v191, 127
      %v193 = vstv %s190
      %v194 = vadd.s32 %v193, %v192
      %vm195 = vcmp.lt.s32.totalorder %v194, 400
      %v196 = vsel %vm195, 1, 0
      %vm197 = vcmp.eq.s32.totalorder %v196, 1
      %v198 = vsel %vm197, %v55, 0.0
      %v199 = vsel %vm197, %v59, 0.0
      %v200 = vsel %vm197, %v63, 0.0
      %v201 = vsel %vm197, %v67, 0.0
      %v202 = vsel %vm197, %v71, 0.0
      %v203 = vsel %vm197, %v75, 0.0
      %v204 = vsel %vm197, %v79, 0.0
      %v205 = vsel %vm197, %v83, 0.0
      %v206 = vsel %vm197, %v55, -inf
      %v207 = vsel %vm197, %v59, -inf
      %v208 = vsel %vm197, %v63, -inf
      %v209 = vsel %vm197, %v67, -inf
      %v210 = vsel %vm197, %v71, -inf
      %v211 = vsel %vm197, %v75, -inf
      %v212 = vsel %vm197, %v79, -inf
      %v213 = vsel %vm197, %v83, -inf
      %s214 = sadd.s32 %s190, 128
      %v215 = vstv %s214
      %v216 = vadd.s32 %v215, %v192
      %vm217 = vcmp.lt.s32.totalorder %v216, 400
      %v218 = vsel %vm217, 1, 0
      %vm219 = vcmp.eq.s32.totalorder %v218, 1
      %v220 = vsel %vm219, %v56, 0.0
      %v221 = vsel %vm219, %v60, 0.0
      %v222 = vsel %vm219, %v64, 0.0
      %v223 = vsel %vm219, %v68, 0.0
      %v224 = vsel %vm219, %v72, 0.0
      %v225 = vsel %vm219, %v76, 0.0
      %v226 = vsel %vm219, %v80, 0.0
      %v227 = vsel %vm219, %v84, 0.0
      %v228 = vsel %vm219, %v56, -inf
      %v229 = vsel %vm219, %v60, -inf
      %v230 = vsel %vm219, %v64, -inf
      %v231 = vsel %vm219, %v68, -inf
      %v232 = vsel %vm219, %v72, -inf
      %v233 = vsel %vm219, %v76, -inf
      %v234 = vsel %vm219, %v80, -inf
      %v235 = vsel %vm219, %v84, -inf
      %v236 = vadd.f32 %v198, %v220
      %v237 = vadd.f32 %v199, %v221
      %v238 = vadd.f32 %v200, %v222
      %v239 = vadd.f32 %v201, %v223
      %v240 = vadd.f32 %v202, %v224
      %v241 = vadd.f32 %v203, %v225
      %v242 = vadd.f32 %v204, %v226
      %v243 = vadd.f32 %v205, %v227
      %v244 = vmax.f32 %v206, %v228
      %v245 = vmax.f32 %v207, %v229
      %v246 = vmax.f32 %v208, %v230
      %v247 = vmax.f32 %v209, %v231
      %v248 = vmax.f32 %v210, %v232
      %v249 = vmax.f32 %v211, %v233
      %v250 = vmax.f32 %v212, %v234
      %v251 = vmax.f32 %v213, %v235
      %s252 = sadd.s32 %s190, 256
      %v253 = vstv %s252
      %v254 = vadd.s32 %v253, %v192
      %vm255 = vcmp.lt.s32.totalorder %v254, 400
      %v256 = vsel %vm255, 1, 0
      %vm257 = vcmp.eq.s32.totalorder %v256, 1
      %v258 = vsel %vm257, %v57, 0.0
      %v259 = vsel %vm257, %v61, 0.0
      %v260 = vsel %vm257, %v65, 0.0
      %v261 = vsel %vm257, %v69, 0.0
      %v262 = vsel %vm257, %v73, 0.0
      %v263 = vsel %vm257, %v77, 0.0
      %v264 = vsel %vm257, %v81, 0.0
      %v265 = vsel %vm257, %v85, 0.0
      %v266 = vsel %vm257, %v57, -inf
      %v267 = vsel %vm257, %v61, -inf
      %v268 = vsel %vm257, %v65, -inf
      %v269 = vsel %vm257, %v69, -inf
      %v270 = vsel %vm257, %v73, -inf
      %v271 = vsel %vm257, %v77, -inf
      %v272 = vsel %vm257, %v81, -inf
      %v273 = vsel %vm257, %v85, -inf
      %v274 = vadd.f32 %v236, %v258
      %v275 = vadd.f32 %v237, %v259
      %v276 = vadd.f32 %v238, %v260
      %v277 = vadd.f32 %v239, %v261
      %v278 = vadd.f32 %v240, %v262
      %v279 = vadd.f32 %v241, %v263
      %v280 = vadd.f32 %v242, %v264
      %v281 = vadd.f32 %v243, %v265
      %v282 = vmax.f32 %v244, %v266
      %v283 = vmax.f32 %v245, %v267
      %v284 = vmax.f32 %v246, %v268
      %v285 = vmax.f32 %v247, %v269
      %v286 = vmax.f32 %v248, %v270
      %v287 = vmax.f32 %v249, %v271
      %v288 = vmax.f32 %v250, %v272
      %v289 = vmax.f32 %v251, %v273
      %s290 = sadd.s32 %s190, 384
      %v291 = vstv %s290
      %v292 = vadd.s32 %v291, %v192
      %vm293 = vcmp.lt.s32.totalorder %v292, 400
      %v294 = vsel %vm293, 1, 0
      %vm295 = vcmp.eq.s32.totalorder %v294, 1
      %v296 = vsel %vm295, %v58, 0.0
      %v297 = vsel %vm295, %v62, 0.0
      %v298 = vsel %vm295, %v66, 0.0
      %v299 = vsel %vm295, %v70, 0.0
      %v300 = vsel %vm295, %v74, 0.0
      %v301 = vsel %vm295, %v78, 0.0
      %v302 = vsel %vm295, %v82, 0.0
      %v303 = vsel %vm295, %v86, 0.0
      %v304 = vsel %vm295, %v58, -inf
      %v305 = vsel %vm295, %v62, -inf
      %v306 = vsel %vm295, %v66, -inf
      %v307 = vsel %vm295, %v70, -inf
      %v308 = vsel %vm295, %v74, -inf
      %v309 = vsel %vm295, %v78, -inf
      %v310 = vsel %vm295, %v82, -inf
      %v311 = vsel %vm295, %v86, -inf
      %v312 = vadd.f32 %v274, %v296
      %v313 = vadd.f32 %v275, %v297
      %v314 = vadd.f32 %v276, %v298
      %v315 = vadd.f32 %v277, %v299
      %v316 = vadd.f32 %v278, %v300
      %v317 = vadd.f32 %v279, %v301
      %v318 = vadd.f32 %v280, %v302
      %v319 = vadd.f32 %v281, %v303
      %v320 = vmax.f32 %v282, %v304
      %v321 = vmax.f32 %v283, %v305
      %v322 = vmax.f32 %v284, %v306
      %v323 = vmax.f32 %v285, %v307
      %v324 = vmax.f32 %v286, %v308
      %v325 = vmax.f32 %v287, %v309
      %v326 = vmax.f32 %v288, %v310
      %v327 = vmax.f32 %v289, %v311
      %v328 = vld [vmem:[#allocation2] sm:$0xff]
      %v329 = vld [vmem:[#allocation2 + $0x8] sm:$0xff]
      %v330 = vld [vmem:[#allocation2 + $0x10] sm:$0xff]
      %v331 = vld [vmem:[#allocation2 + $0x18] sm:$0xff]
      %v332 = vld [vmem:[#allocation2 + $0x20] sm:$0xff]
      %v333 = vld [vmem:[#allocation2 + $0x28] sm:$0xff]
      %v334 = vld [vmem:[#allocation2 + $0x30] sm:$0xff]
      %v335 = vld [vmem:[#allocation2 + $0x38] sm:$0xff]
      %v336 = vadd.f32 %v328, %v312
      %v337 = vadd.f32 %v329, %v313
      %v338 = vadd.f32 %v330, %v314
      %v339 = vadd.f32 %v331, %v315
      %v340 = vadd.f32 %v332, %v316
      %v341 = vadd.f32 %v333, %v317
      %v342 = vadd.f32 %v334, %v318
      %v343 = vadd.f32 %v335, %v319
      %344 = vst [vmem:[#allocation2] sm:$0xff] %v336
      %345 = vst [vmem:[#allocation2 + $0x8] sm:$0xff] %v337
      %346 = vst [vmem:[#allocation2 + $0x10] sm:$0xff] %v338
      %347 = vst [vmem:[#allocation2 + $0x18] sm:$0xff] %v339
      %348 = vst [vmem:[#allocation2 + $0x20] sm:$0xff] %v340
      %349 = vst [vmem:[#allocation2 + $0x28] sm:$0xff] %v341
      %350 = vst [vmem:[#allocation2 + $0x30] sm:$0xff] %v342
      %351 = vst [vmem:[#allocation2 + $0x38] sm:$0xff] %v343
      %v352 = vld [vmem:[#allocation3] sm:$0xff]
      %v353 = vld [vmem:[#allocation3 + $0x8] sm:$0xff]
      %v354 = vld [vmem:[#allocation3 + $0x10] sm:$0xff]
      %v355 = vld [vmem:[#allocation3 + $0x18] sm:$0xff]
      %v356 = vld [vmem:[#allocation3 + $0x20] sm:$0xff]
      %v357 = vld [vmem:[#allocation3 + $0x28] sm:$0xff]
      %v358 = vld [vmem:[#allocation3 + $0x30] sm:$0xff]
      %v359 = vld [vmem:[#allocation3 + $0x38] sm:$0xff]
      %v360 = vmax.f32 %v352, %v320
      %v361 = vmax.f32 %v353, %v321
      %v362 = vmax.f32 %v354, %v322
      %v363 = vmax.f32 %v355, %v323
      %v364 = vmax.f32 %v356, %v324
      %v365 = vmax.f32 %v357, %v325
      %v366 = vmax.f32 %v358, %v326
      %v367 = vmax.f32 %v359, %v327
      %368 = vst [vmem:[#allocation3] sm:$0xff] %v360
      %369 = vst [vmem:[#allocation3 + $0x8] sm:$0xff] %v361
      %370 = vst [vmem:[#allocation3 + $0x10] sm:$0xff] %v362
      %371 = vst [vmem:[#allocation3 + $0x18] sm:$0xff] %v363
      %372 = vst [vmem:[#allocation3 + $0x20] sm:$0xff] %v364
      %373 = vst [vmem:[#allocation3 + $0x28] sm:$0xff] %v365
      %374 = vst [vmem:[#allocation3 + $0x30] sm:$0xff] %v366
      %375 = vst [vmem:[#allocation3 + $0x38] sm:$0xff] %v367
      %v376 = vld [vmem:[#allocation2] sm:$0xff]
      %v377 = vld [vmem:[#allocation2 + $0x8] sm:$0xff]
      %v378 = vld [vmem:[#allocation2 + $0x10] sm:$0xff]
      %v379 = vld [vmem:[#allocation2 + $0x18] sm:$0xff]
      %v380 = vld [vmem:[#allocation2 + $0x20] sm:$0xff]
      %v381 = vld [vmem:[#allocation2 + $0x28] sm:$0xff]
      %v382 = vld [vmem:[#allocation2 + $0x30] sm:$0xff]
      %v383 = vld [vmem:[#allocation2 + $0x38] sm:$0xff]
      %384 = vadd.xlane.f32.xlu0 %v376
      %v385 = vpop.xlane.xlu0 %384
      %386 = vadd.xlane.f32.xlu0 %v377
      %v387 = vpop.xlane.xlu0 %386
      %388 = vadd.xlane.f32.xlu0 %v378
      %v389 = vpop.xlane.xlu0 %388
      %390 = vadd.xlane.f32.xlu0 %v379
      %v391 = vpop.xlane.xlu0 %390
      %392 = vadd.xlane.f32.xlu0 %v380
      %v393 = vpop.xlane.xlu0 %392
      %394 = vadd.xlane.f32.xlu0 %v381
      %v395 = vpop.xlane.xlu0 %394
      %396 = vadd.xlane.f32.xlu0 %v382
      %v397 = vpop.xlane.xlu0 %396
      %398 = vadd.xlane.f32.xlu0 %v383
      %v399 = vpop.xlane.xlu0 %398
      %v400 = vmul.f32 %v385, 0.0025
      %v401 = vmul.f32 %v387, 0.0025
      %v402 = vmul.f32 %v389, 0.0025
      %v403 = vmul.f32 %v391, 0.0025
      %v404 = vmul.f32 %v393, 0.0025
      %v405 = vmul.f32 %v395, 0.0025
      %v406 = vmul.f32 %v397, 0.0025
      %v407 = vmul.f32 %v399, 0.0025
      %v408 = vld [vmem:[#allocation3] sm:$0xff]
      %v409 = vld [vmem:[#allocation3 + $0x8] sm:$0xff]
      %v410 = vld [vmem:[#allocation3 + $0x10] sm:$0xff]
      %v411 = vld [vmem:[#allocation3 + $0x18] sm:$0xff]
      %v412 = vld [vmem:[#allocation3 + $0x20] sm:$0xff]
      %v413 = vld [vmem:[#allocation3 + $0x28] sm:$0xff]
      %v414 = vld [vmem:[#allocation3 + $0x30] sm:$0xff]
      %v415 = vld [vmem:[#allocation3 + $0x38] sm:$0xff]
      %416 = vmax.xlane.f32.xlu0 %v408
      %v417 = vpop.xlane.xlu0 %416
      %418 = vmax.xlane.f32.xlu0 %v409
      %v419 = vpop.xlane.xlu0 %418
      %420 = vmax.xlane.f32.xlu0 %v410
      %v421 = vpop.xlane.xlu0 %420
      %422 = vmax.xlane.f32.xlu0 %v411
      %v423 = vpop.xlane.xlu0 %422
      %424 = vmax.xlane.f32.xlu0 %v412
      %v425 = vpop.xlane.xlu0 %424
      %426 = vmax.xlane.f32.xlu0 %v413
      %v427 = vpop.xlane.xlu0 %426
      %428 = vmax.xlane.f32.xlu0 %v414
      %v429 = vpop.xlane.xlu0 %428
      %430 = vmax.xlane.f32.xlu0 %v415
      %v431 = vpop.xlane.xlu0 %430
      %v440 = vlaneseq
      %v441 = vshrl.u32 %v440, 7
      %v442 = vsub.s32 %v192, %v441
      %v443 = vrot.slane %v400, %v442
      %v444 = vadd.s32 %v192, 4294967288
      %v445 = vlaneseq
      %v446 = vshrl.u32 %v445, 7
      %v447 = vsub.s32 %v444, %v446
      %v448 = vrot.slane %v401, %v447
      %vm449 = vcmask 130112
      %v450 = vsel %vm449, %v448, %v443
      %v451 = vadd.s32 %v192, 4294967280
      %v452 = vlaneseq
      %v453 = vshrl.u32 %v452, 7
      %v454 = vsub.s32 %v451, %v453
      %v455 = vrot.slane %v402, %v454
      %vm456 = vcmask 195712
      %v457 = vsel %vm456, %v455, %v450
      %v458 = vadd.s32 %v192, 4294967272
      %v459 = vlaneseq
      %v460 = vshrl.u32 %v459, 7
      %v461 = vsub.s32 %v458, %v460
      %v462 = vrot.slane %v403, %v461
      %vm463 = vcmask 261312
      %v464 = vsel %vm463, %v462, %v457
      %v465 = vlaneseq
      %v466 = vshrl.u32 %v465, 7
      %v467 = vsub.s32 %v192, %v466
      %v468 = vrot.slane %v404, %v467
      %v469 = vlaneseq
      %v470 = vshrl.u32 %v469, 7
      %v471 = vsub.s32 %v444, %v470
      %v472 = vrot.slane %v405, %v471
      %v473 = vsel %vm449, %v472, %v468
      %v474 = vlaneseq
      %v475 = vshrl.u32 %v474, 7
      %v476 = vsub.s32 %v451, %v475
      %v477 = vrot.slane %v406, %v476
      %v478 = vsel %vm456, %v477, %v473
      %v479 = vlaneseq
      %v480 = vshrl.u32 %v479, 7
      %v481 = vsub.s32 %v458, %v480
      %v482 = vrot.slane %v407, %v481
      %v483 = vsel %vm463, %v482, %v478
      %vm484 = vcmask 1041409
      %v485 = vsel %vm484, %v483, %v464
      %vm487 = vcmask 254976
      %488 = vst.msk [vmem:[#allocation4] sm:$0x3] %vm487, %v485
      %v497 = vlaneseq
      %v498 = vshrl.u32 %v497, 7
      %v499 = vsub.s32 %v192, %v498
      %v500 = vrot.slane %v417, %v499
      %v501 = vlaneseq
      %v502 = vshrl.u32 %v501, 7
      %v503 = vsub.s32 %v444, %v502
      %v504 = vrot.slane %v419, %v503
      %v505 = vsel %vm449, %v504, %v500
      %v506 = vlaneseq
      %v507 = vshrl.u32 %v506, 7
      %v508 = vsub.s32 %v451, %v507
      %v509 = vrot.slane %v421, %v508
      %v510 = vsel %vm456, %v509, %v505
      %v511 = vlaneseq
      %v512 = vshrl.u32 %v511, 7
      %v513 = vsub.s32 %v458, %v512
      %v514 = vrot.slane %v423, %v513
      %v515 = vsel %vm463, %v514, %v510
      %v516 = vlaneseq
      %v517 = vshrl.u32 %v516, 7
      %v518 = vsub.s32 %v192, %v517
      %v519 = vrot.slane %v425, %v518
      %v520 = vlaneseq
      %v521 = vshrl.u32 %v520, 7
      %v522 = vsub.s32 %v444, %v521
      %v523 = vrot.slane %v427, %v522
      %v524 = vsel %vm449, %v523, %v519
      %v525 = vlaneseq
      %v526 = vshrl.u32 %v525, 7
      %v527 = vsub.s32 %v451, %v526
      %v528 = vrot.slane %v429, %v527
      %v529 = vsel %vm456, %v528, %v524
      %v530 = vlaneseq
      %v531 = vshrl.u32 %v530, 7
      %v532 = vsub.s32 %v458, %v531
      %v533 = vrot.slane %v431, %v532
      %v534 = vsel %vm463, %v533, %v529
      %v535 = vsel %vm484, %v534, %v515
      %537 = vst.msk [vmem:[#allocation4 + $0x2] sm:$0x3] %vm487, %v535
      %v538 = vld [vmem:[#allocation4] sm:$0xf]
      %v539 = vld [vmem:[%s1] sm:$0xff]
      %v540 = vld [vmem:[%s1 + $0x8] sm:$0xff]
      %v541 = vld [vmem:[%s1 + $0x10] sm:$0xff]
      %v542 = vld [vmem:[%s1 + $0x18] sm:$0xff]
      %v543 = vld [vmem:[%s2] sm:$0x1]
      %v545 = vlaneseq
      %v546 = vshrl.u32 %v545, 7
      %v547 = vsub.s32 0, %v546
      %v548 = vrot.slane %v543, %v547
      %vm550 = vcmask 261120
      %v552 = vsel %vm550, %v538, 0
      %554 = vmatprep.subr.mxu0 0.0
      %555 = vmatpush1.msra.mxu0 %v539
      %556 = vmatprep.subr.mxu0 0.0
      %557 = vmatpush1.msra.mxu0 %v540
      %558 = vmatprep.subr.mxu0 0.0
      %559 = vmatpush1.msra.mxu0 %v541
      %560 = vmatprep.subr.mxu0 0.0
      %561 = vmatpush1.msra.mxu0 %v542
      %562 = vmatprep.subr.mxu0 0.0
      %563 = vmatpush1.msra.mxu0 0.0
      %564 = vmatprep.subr.mxu0 0.0
      %565 = vmatpush1.msra.mxu0 0.0
      %566 = vmatprep.subr.mxu0 0.0
      %567 = vmatpush1.msra.mxu0 0.0
      %568 = vmatprep.subr.mxu0 0.0
      %569 = vmatpush1.msra.mxu0 0.0
      %570 = vmatprep.subr.mxu0 0.0
      %571 = vmatpush1.msra.mxu0 0.0
      %572 = vmatprep.subr.mxu0 0.0
      %573 = vmatpush1.msra.mxu0 0.0
      %574 = vmatprep.subr.mxu0 0.0
      %575 = vmatpush1.msra.mxu0 0.0
      %576 = vmatprep.subr.mxu0 0.0
      %577 = vmatpush1.msra.mxu0 0.0
      %578 = vmatprep.subr.mxu0 0.0
      %579 = vmatpush1.msra.mxu0 0.0
      %580 = vmatprep.subr.mxu0 0.0
      %581 = vmatpush1.msra.mxu0 0.0
      %582 = vmatprep.subr.mxu0 0.0
      %583 = vmatpush1.msra.mxu0 0.0
      %584 = vmatprep.subr.mxu0 0.0
      %585 = vmatpush1.msra.mxu0 0.0
      %586 = vmatprep.subr.mxu0 0.0
      %587 = vmatpush1.msra.mxu0 0.0
      %588 = vmatprep.subr.mxu0 0.0
      %589 = vmatpush1.msra.mxu0 0.0
      %590 = vmatprep.subr.mxu0 0.0
      %591 = vmatpush1.msra.mxu0 0.0
      %592 = vmatprep.subr.mxu0 0.0
      %593 = vmatpush1.msra.mxu0 0.0
      %594 = vmatprep.subr.mxu0 0.0
      %595 = vmatpush1.msra.mxu0 0.0
      %596 = vmatprep.subr.mxu0 0.0
      %597 = vmatpush1.msra.mxu0 0.0
      %598 = vmatprep.subr.mxu0 0.0
      %599 = vmatpush1.msra.mxu0 0.0
      %600 = vmatprep.subr.mxu0 0.0
      %601 = vmatpush1.msra.mxu0 0.0
      %602 = vmatprep.subr.mxu0 0.0
      %603 = vmatpush1.msra.mxu0 0.0
      %604 = vmatprep.subr.mxu0 0.0
      %605 = vmatpush1.msra.mxu0 0.0
      %606 = vmatprep.subr.mxu0 0.0
      %607 = vmatpush1.msra.mxu0 0.0
      %608 = vmatprep.subr.mxu0 0.0
      %609 = vmatpush1.msra.mxu0 0.0
      %610 = vmatprep.subr.mxu0 0.0
      %611 = vmatpush1.msra.mxu0 0.0
      %612 = vmatprep.subr.mxu0 0.0
      %613 = vmatpush1.msra.mxu0 0.0
      %614 = vmatprep.subr.mxu0 0.0
      %615 = vmatpush1.msra.mxu0 0.0
      %616 = vmatprep.subr.mxu0 0.0
      %617 = vmatpush1.msra.mxu0 0.0
      %618 = vmatprep.mubr.f32.mxu0 0.0
      %619 = vmatmul.mubr.f32.gmra.mrb[0].mxu0 %v552
      %v620 = vpop.f32.mrb[0].mxu0
      %v621 = vadd.f32 %v548, %v620
      %v622 = vpop.f32.mrb[0].mxu0
      %623 = vdwg.mxu0
      %v624 = vmax.f32 %v621, 0.0
      %v625 = vld [vmem:[%s3] sm:$0x3]
      %v626 = vld [vmem:[%s4] sm:$0x1]
      %v628 = vlaneseq
      %v629 = vshrl.u32 %v628, 7
      %v630 = vsub.s32 0, %v629
      %v631 = vrot.slane %v626, %v630
      %vm633 = vcmask 15360
      %v635 = vsel %vm633, %v624, 0
      %vm637 = vcmask 1041408
      %v639 = vsel %vm637, %v625, 0
      %641 = vmatprep.subr.mxu0 0.0
      %642 = vmatpush1.msra.mxu0 %v639
      %643 = vmatprep.subr.mxu0 0.0
      %644 = vmatpush1.msra.mxu0 0.0
      %645 = vmatprep.subr.mxu0 0.0
      %646 = vmatpush1.msra.mxu0 0.0
      %647 = vmatprep.subr.mxu0 0.0
      %648 = vmatpush1.msra.mxu0 0.0
      %649 = vmatprep.subr.mxu0 0.0
      %650 = vmatpush1.msra.mxu0 0.0
      %651 = vmatprep.subr.mxu0 0.0
      %652 = vmatpush1.msra.mxu0 0.0
      %653 = vmatprep.subr.mxu0 0.0
      %654 = vmatpush1.msra.mxu0 0.0
      %655 = vmatprep.subr.mxu0 0.0
      %656 = vmatpush1.msra.mxu0 0.0
      %657 = vmatprep.subr.mxu0 0.0
      %658 = vmatpush1.msra.mxu0 0.0
      %659 = vmatprep.subr.mxu0 0.0
      %660 = vmatpush1.msra.mxu0 0.0
      %661 = vmatprep.subr.mxu0 0.0
      %662 = vmatpush1.msra.mxu0 0.0
      %663 = vmatprep.subr.mxu0 0.0
      %664 = vmatpush1.msra.mxu0 0.0
      %665 = vmatprep.subr.mxu0 0.0
      %666 = vmatpush1.msra.mxu0 0.0
      %667 = vmatprep.subr.mxu0 0.0
      %668 = vmatpush1.msra.mxu0 0.0
      %669 = vmatprep.subr.mxu0 0.0
      %670 = vmatpush1.msra.mxu0 0.0
      %671 = vmatprep.subr.mxu0 0.0
      %672 = vmatpush1.msra.mxu0 0.0
      %673 = vmatprep.subr.mxu0 0.0
      %674 = vmatpush1.msra.mxu0 0.0
      %675 = vmatprep.subr.mxu0 0.0
      %676 = vmatpush1.msra.mxu0 0.0
      %677 = vmatprep.subr.mxu0 0.0
      %678 = vmatpush1.msra.mxu0 0.0
      %679 = vmatprep.subr.mxu0 0.0
      %680 = vmatpush1.msra.mxu0 0.0
      %681 = vmatprep.subr.mxu0 0.0
      %682 = vmatpush1.msra.mxu0 0.0
      %683 = vmatprep.subr.mxu0 0.0
      %684 = vmatpush1.msra.mxu0 0.0
      %685 = vmatprep.subr.mxu0 0.0
      %686 = vmatpush1.msra.mxu0 0.0
      %687 = vmatprep.subr.mxu0 0.0
      %688 = vmatpush1.msra.mxu0 0.0
      %689 = vmatprep.subr.mxu0 0.0
      %690 = vmatpush1.msra.mxu0 0.0
      %691 = vmatprep.subr.mxu0 0.0
      %692 = vmatpush1.msra.mxu0 0.0
      %693 = vmatprep.subr.mxu0 0.0
      %694 = vmatpush1.msra.mxu0 0.0
      %695 = vmatprep.subr.mxu0 0.0
      %696 = vmatpush1.msra.mxu0 0.0
      %697 = vmatprep.subr.mxu0 0.0
      %698 = vmatpush1.msra.mxu0 0.0
      %699 = vmatprep.subr.mxu0 0.0
      %700 = vmatpush1.msra.mxu0 0.0
      %701 = vmatprep.subr.mxu0 0.0
      %702 = vmatpush1.msra.mxu0 0.0
      %703 = vmatprep.subr.mxu0 0.0
      %704 = vmatpush1.msra.mxu0 0.0
      %705 = vmatprep.mubr.f32.mxu0 0.0
      %706 = vmatmul.mubr.f32.gmra.mrb[0].mxu0 %v635
      %v707 = vpop.f32.mrb[0].mxu0
      %v708 = vadd.f32 %v631, %v707
      %v709 = vpop.f32.mrb[0].mxu0
      %710 = vdwg.mxu0
      %v711 = vxor.u32 %v708, 2147483648
      %v712 = vmul.f32 %v711, 1.442695
      %v713 = vpow.pop %v712
      %v714 = vadd.f32 %v713, 1.0
      %v715 = vrcp.pop %v714
      %v716 = vmul.f32 1.0, %v715
      %v718 = vrot.slane %v716, 2
      %v720 = vadd.f32 %v716, %v718
      %721 = vst.msk [vmem:[#allocation8] sm:$0x3] %vm487, %v720
    $region37: #{tpu_custom_call.1} parent=1 // pred_fallthru
      _
    // Predicated region
    $region38: #{tpu_custom_call.1} parent=1 // pred_check
      _
    $region39: #{tpu_custom_call.1} parent=1 // pred_check_branch
      %723 = sbr.rel (0) target = $region41
    $region40: #{tpu_custom_call.1} parent=1 // pred_region
      %s725 = ssub.s32 32, 32
      %726 = vsyncadd [#allocation7], %s725
      %s728 = sshll.u32 [#allocation8], 4
      %s729 = int_to_ptr.vmem [resolvable:$true] %s728
      %731 = dma.vmem_to_hbm [thread:$0]  %s729, 32, %s5, [#allocation7]
    $region41: #{tpu_custom_call.1} parent=1 // pred_fallthru
      _
    // Predicated region
    $region42: #{tpu_custom_call.1} parent=1 // pred_check
      _
    $region43: #{tpu_custom_call.1} parent=1 // pred_check_branch
      %733 = sbr.rel (0) target = $region45
    $region44: #{tpu_custom_call.1} parent=1 // pred_region
      %734 = dma.done [#allocation7], 32
    $region45: #{tpu_custom_call.1} parent=1 // pred_fallthru
      _
    %735 = vsyncpa [#allocation6], 1
    %736 = vsyncpa [#allocation7], 1

</llo_original>
